<compile_context>
chip_gen: v7x
topology: tpu7x:2x2x1
jax: 0.10.0
libtpu: 0.0.40
codegen_flags: <defaults>
</compile_context>

<pallas_src>
import jax
import jax.numpy as jnp
from jax.experimental import pallas as pl
from jax.experimental.pallas import tpu as pltpu


def _mlp_kernel(x_ref, w1_ref, b1_ref, w2row_ref, b2_ref, o_ref):
    # Cast x to the weight dtype *inside* the kernel (no-op for f32).  The
    # HBM stream of x stays in its native dtype; the convert is a handful of
    # VPU ops fully hidden under the MXU/DMA.
    x = x_ref[...].astype(w1_ref.dtype)
    # fc1 on the MXU; accumulation is always f32.
    h = jnp.dot(x, w1_ref[...], preferred_element_type=jnp.float32)
    # bias + ReLU in f32 on the VPU.
    h = jnp.maximum(h + b1_ref[...], 0.0)
    # Dropout(p=0.3): eval-mode identity (no-op).
    # fc2 (256 -> 1) stays off the MXU: broadcast multiply (VPU) + lane
    # reduction (XLU).  Result is emitted as a lane-dense (1, 1, TB) row so
    # the store is an unmasked vst and the writeback DMA is contiguous.
    row = jnp.sum(h * w2row_ref[...], axis=-1)          # (TB,)
    o_ref[...] = (row + b2_ref[0]).reshape(o_ref.shape)  # b2 scalar from SMEM


def _round_up(v, m):
    return ((v + m - 1) // m) * m


def _pick_batch_tile(B, tb, row_mult=8, mxu_rows=256):
    """Choose the batch tile TB.

    * multiple of 8 (f32 sublane constraint on the block shape)
    * capped so there are >=2 grid steps whenever B allows it (v7x megacore;
      no-op on single-TC v5e/v6e)
    * floored to a multiple of 256 when large, for full MXU M-dim passes
    """
    tb = max(row_mult, _round_up(tb, row_mult))
    if B <= row_mult:
        return row_mult
    cap = _round_up((B + 1) // 2, row_mult)   # guarantees >=2 grid steps
    t = min(tb, cap, _round_up(B, row_mult))
    if t >= mxu_rows:
        t -= t % mxu_rows
    return max(t, row_mult)


def bert_regression_forward(x, w1, b1, w2, b2, *, use_bf16=False, tb=1024):
    """Fused MLP forward pass.

    x  : (B, D)  float32
    w1 : (D, H)  float32   (transposed PyTorch fc1.weight)
    b1 : (H,)    float32
    w2 : (H,) or (H,1) or (1,H) float32 (fc2.weight)
    b2 : (1,)    float32
    returns (B, 1) float32
    """
    x = jnp.asarray(x, jnp.float32)
    B, D = x.shape
    H = w1.shape[1]

    # --- host-side prep (no padding / copying of x) --------------------------
    w1 = jnp.asarray(w1, jnp.bfloat16 if use_bf16 else jnp.float32)
    b1_row = jnp.asarray(b1, jnp.float32).reshape(1, H)
    w2_row = jnp.asarray(w2, jnp.float32).reshape(1, H)
    b2_vec = jnp.asarray(b2, jnp.float32).reshape(1)

    # --- batch tiling ---------------------------------------------------------
    TB = _pick_batch_tile(B, tb)
    num_tiles = pl.cdiv(B, TB)          # partial last block handled by Pallas
    grid = (num_tiles,)

    # --- VMEM budget (double-buffered x tile + resident weights + h) ---------
    w_item = 2 if use_bf16 else 4
    est = 2 * TB * D * 4                      # x tile (f32), double-buffered
    est += 2 * D * H * w_item                 # w1 (resident; 2 buffers worst case)
    est += 4 * 8 * _round_up(H, 128) * 4      # b1 / w2 rows (padded)
    est += 2 * 8 * _round_up(TB, 128) * 4     # lane-dense output rows
    est += 2 * TB * H * 4                     # h intermediate + cast headroom
    vmem_limit = int(min(32 << 20, max(8 << 20, est + (4 << 20))))

    out = pl.pallas_call(
        _mlp_kernel,
        out_shape=jax.ShapeDtypeStruct((num_tiles, 1, TB), jnp.float32),
        grid=grid,
        in_specs=[
            pl.BlockSpec((TB, D), lambda i: (i, 0)),   # x: batch-tiled stream
            pl.BlockSpec((D, H), lambda i: (0, 0)),    # w1: resident
            pl.BlockSpec((1, H), lambda i: (0, 0)),    # b1: resident
            pl.BlockSpec((1, H), lambda i: (0, 0)),    # w2 row: resident
            pl.BlockSpec(memory_space=pltpu.MemorySpace.SMEM),  # b2 scalar
        ],
        out_specs=pl.BlockSpec((1, 1, TB), lambda i: (i, 0, 0)),
        compiler_params=pltpu.CompilerParams(
            dimension_semantics=("parallel",),
            vmem_limit_bytes=vmem_limit,
        ),
    )(x, w1, b1_row, w2_row, b2_vec)

    # Un-tile lane-dense output and drop the (garbage) tail rows of the last
    # partial block.  Rows are independent inside the kernel, so this is safe.
    return out.reshape(num_tiles * TB)[:B].reshape(B, 1)


def init_params(key, input_dim, hidden=256, out=1):
    """PyTorch nn.Linear default init: uniform(-1/sqrt(fan_in), 1/sqrt(fan_in))."""
    k1, k2, k3, k4 = jax.random.split(key, 4)
    bound1 = 1.0 / jnp.sqrt(jnp.float32(input_dim))
    bound2 = 1.0 / jnp.sqrt(jnp.float32(hidden))
    w1 = jax.random.uniform(k1, (input_dim, hidden), jnp.float32, -bound1, bound1)
    b1 = jax.random.uniform(k2, (hidden,), jnp.float32, -bound1, bound1)
    w2 = jax.random.uniform(k3, (hidden,), jnp.float32, -bound2, bound2)
    b2 = jax.random.uniform(k4, (out,), jnp.float32, -bound2, bound2)
    return w1, b1, w2, b2


def _ref_forward(x, w1, b1, w2, b2):
    h = jnp.maximum(x @ w1 + b1[None, :], 0.0)
    return h @ w2.reshape(-1, 1) + b2[None, :]


if __name__ == "__main__":
    # input_dim = 768 (BERT [CLS] embedding) + 12 numeric features = 780
    INPUT_DIM = 780
    key = jax.random.PRNGKey(0)
    kx, kp = jax.random.split(key)
    w1, b1, w2, b2 = init_params(kp, INPUT_DIM)

    # --- small-batch f32 path (single grid step, exact) ----------------------
    B1 = 8
    x1 = jax.random.normal(kx, (B1, INPUT_DIM), jnp.float32)
    y1 = bert_regression_forward(x1, w1, b1, w2, b2)
    jax.block_until_ready(y1)
    ref1 = _ref_forward(x1, w1, b1, w2, b2)
    assert y1.shape == (B1, 1)
    assert jnp.allclose(y1, ref1, atol=1e-4, rtol=1e-4)

    # --- larger batch: multi-step grid, partial last tile, bf16 MXU path -----
    B2 = 600
    x2 = jax.random.normal(jax.random.PRNGKey(1), (B2, INPUT_DIM), jnp.float32)
    y2 = bert_regression_forward(x2, w1, b1, w2, b2, use_bf16=True)
    jax.block_until_ready(y2)
    ref2 = _ref_forward(x2, w1, b1, w2, b2)
    assert y2.shape == (B2, 1)
    assert jnp.allclose(y2, ref2, atol=5e-2, rtol=5e-2)

    print("KERNEL_OK")
</pallas_src>

<mosaic_0001>
module attributes {stable_mosaic.version = 11 : i64} {
  func.func @_mlp_kernel(%arg0: i32, %arg1: memref<8x780xf32, #tpu.memory_space<vmem>>, %arg2: memref<780x256xf32, #tpu.memory_space<vmem>>, %arg3: memref<1x256xf32, #tpu.memory_space<vmem>>, %arg4: memref<1x256xf32, #tpu.memory_space<vmem>>, %arg5: memref<1xf32, #tpu.memory_space<smem>>, %arg6: memref<1x1x8xf32, #tpu.memory_space<vmem>>) attributes {dimension_semantics = [#tpu.dimension_semantics<parallel>], iteration_bounds = array<i64: 1>, scalar_prefetch = 0 : i64, scratch_operands = 0 : i64, tpu.core_type = #tpu.core_type<tc>, window_params = [{transform_indices = @transform_0, window_bounds = array<i64: 8, 780>}, {pipeline_mode = #tpu.pipeline_mode<synchronous>, transform_indices = @transform_1, window_bounds = array<i64: 780, 256>}, {pipeline_mode = #tpu.pipeline_mode<synchronous>, transform_indices = @transform_2, window_bounds = array<i64: 1, 256>}, {pipeline_mode = #tpu.pipeline_mode<synchronous>, transform_indices = @transform_3, window_bounds = array<i64: 1, 256>}, {transform_indices = @transform_4, window_bounds = array<i64: 1>}, {transform_indices = @transform_5, window_bounds = array<i64: 1, 1, 8>}]} {
    %c0 = arith.constant 0 : index
    %c0_0 = arith.constant 0 : index
    %0 = vector.load %arg1[%c0, %c0_0] : memref<8x780xf32, #tpu.memory_space<vmem>>, vector<8x780xf32>
    %c0_1 = arith.constant 0 : index
    %c0_2 = arith.constant 0 : index
    %1 = vector.load %arg2[%c0_1, %c0_2] : memref<780x256xf32, #tpu.memory_space<vmem>>, vector<780x256xf32>
    %cst = arith.constant dense<0.000000e+00> : vector<8x256xf32>
    %2 = tpu.matmul %0, %1, %cst {dimension_numbers = #tpu.dot_dimension_numbers<[1], [0], [0], [1], [0, 0, 1, 1], [], []>} : vector<8x780xf32>, vector<780x256xf32>, vector<8x256xf32> -> vector<8x256xf32>
    %c0_3 = arith.constant 0 : index
    %c0_4 = arith.constant 0 : index
    %3 = vector.load %arg3[%c0_3, %c0_4] : memref<1x256xf32, #tpu.memory_space<vmem>>, vector<1x256xf32>
    %4 = vector.broadcast %3 : vector<1x256xf32> to vector<8x256xf32>
    %5 = arith.addf %2, %4 : vector<8x256xf32>
    %cst_5 = arith.constant 0.000000e+00 : f32
    %6 = vector.broadcast %cst_5 : f32 to vector<8x256xf32>
    %7 = arith.maximumf %5, %6 : vector<8x256xf32>
    %c0_6 = arith.constant 0 : index
    %c0_7 = arith.constant 0 : index
    %8 = vector.load %arg4[%c0_6, %c0_7] : memref<1x256xf32, #tpu.memory_space<vmem>>, vector<1x256xf32>
    %9 = vector.broadcast %8 : vector<1x256xf32> to vector<8x256xf32>
    %10 = arith.mulf %7, %9 : vector<8x256xf32>
    %cst_8 = arith.constant dense<0.000000e+00> : vector<8xf32>
    %11 = vector.multi_reduction <add>, %10, %cst_8 [1] : vector<8x256xf32> to vector<8xf32>
    %c0_9 = arith.constant 0 : index
    %12 = memref.load %arg5[%c0_9] : memref<1xf32, #tpu.memory_space<smem>>
    %13 = vector.broadcast %12 : f32 to vector<8xf32>
    %14 = arith.addf %11, %13 : vector<8xf32>
    %15 = vector.shape_cast %14 : vector<8xf32> to vector<1x1x8xf32>
    %c0_10 = arith.constant 0 : index
    %c0_11 = arith.constant 0 : index
    %c0_12 = arith.constant 0 : index
    %16 = vector.load %arg6[%c0_10, %c0_11, %c0_12] : memref<1x1x8xf32, #tpu.memory_space<vmem>>, vector<1x1x8xf32>
    tpu.vector_store %arg6[%c0_10, %c0_11, %c0_12], %15 {strides = array<i32>} : memref<1x1x8xf32, #tpu.memory_space<vmem>>, vector<1x1x8xf32>,
    return
  }
  func.func @transform_0(%arg0: i32) -> (i32, i32) {
    %c0_i32 = arith.constant 0 : i32
    %c0_i32_0 = arith.constant 0 : i32
    return %arg0, %c0_i32 : i32, i32
  }
  func.func @transform_1(%arg0: i32) -> (i32, i32) {
    %c0_i32 = arith.constant 0 : i32
    %c0_i32_0 = arith.constant 0 : i32
    %c0_i32_1 = arith.constant 0 : i32
    return %c0_i32, %c0_i32_0 : i32, i32
  }
  func.func @transform_2(%arg0: i32) -> (i32, i32) {
    %c0_i32 = arith.constant 0 : i32
    %c0_i32_0 = arith.constant 0 : i32
    %c0_i32_1 = arith.constant 0 : i32
    return %c0_i32, %c0_i32_0 : i32, i32
  }
  func.func @transform_3(%arg0: i32) -> (i32, i32) {
    %c0_i32 = arith.constant 0 : i32
    %c0_i32_0 = arith.constant 0 : i32
    %c0_i32_1 = arith.constant 0 : i32
    return %c0_i32, %c0_i32_0 : i32, i32
  }
  func.func @transform_4(%arg0: i32) -> i32 {
    %c0_i32 = arith.constant 0 : i32
    %c0_i32_0 = arith.constant 0 : i32
    return %c0_i32 : i32
  }
  func.func @transform_5(%arg0: i32) -> (i32, i32, i32) {
    %c0_i32 = arith.constant 0 : i32
    %c0_i32_0 = arith.constant 0 : i32
    %c0_i32_1 = arith.constant 0 : i32
    return %arg0, %c0_i32, %c0_i32_0 : i32, i32, i32
  }
}

</mosaic_0001>

<llo_original>
// kernel: tpu_custom_call.1
$region0: #{tpu_custom_call.1}
  #allocation0 [shape = 'u32[]', space=smem, size = 0x4, offset = 0x4, fixed_abs, tag = 'smem constant byte address 0x4 - core index']
  #allocation1 [shape = 'u32[144,128]{1,0:T(1,128)}', space=vmem, size = 0x12000, scoped, tag = 'internal scratch']
  #allocation2 [shape = 'f32[1]{0:T(128)S(6)}', space=smem, size = 0x200, scoped, tag = 'scoped memory for tpu_custom_call.1']
  %s0 = inlined_call_operand.hbm [shape: f32[8,780], index: 0, kind: input, shape index: {}]
  %s1 = inlined_call_operand.hbm [shape: f32[780,256], index: 1, kind: input, shape index: {}]
  %s2 = inlined_call_operand.vmem [shape: f32[1,256], index: 2, kind: input, shape index: {}]
  %s3 = inlined_call_operand.vmem [shape: f32[1,256], index: 3, kind: input, shape index: {}]
  %s4 = inlined_call_operand.<no memory space> [shape: f32[1], index: 4, kind: input, shape index: {}]
  %s5 = inlined_call_operand.hbm [shape: f32[1,1,8], index: 5, kind: output, shape index: {}]
  %s6 = sld [smem:[#allocation0]]
  $region38: #{tpu_custom_call.1} parent=0
    _
  %s8 = ssub.s32 1, %s6
  %s9 = scalar_select 0, %s8, %s6
  %10 = sst [smem:[#allocation2]] %s4
  $region1: #{tpu_custom_call.1} parent=0
    #allocation3 [shape = 'u8[28672]{0}', space=vmem, size = 0x7000, scoped, tag = 'input window, operand 0, single buffered']
    #allocation4 [shape = 's32[1]{0}', space=sflag, size = 0x4, scoped, tag = 'scoped memory for tpu_custom_call.1']
    #allocation5 [shape = 's32[1]{0}', space=sflag, size = 0x4, scoped, tag = 'scoped memory for tpu_custom_call.1']
    #allocation6 [shape = 'u8[802816]{0}', space=vmem, size = 0xc4000, scoped, tag = 'input window, operand 1, single buffered']
    #allocation7 [shape = 's32[1]{0}', space=sflag, size = 0x4, scoped, tag = 'scoped memory for tpu_custom_call.1']
    #allocation8 [shape = 'u8[512]{0}', space=vmem, size = 0x400, scoped, tag = 'output window, operand 0, single buffered']
    %11 = vsyncpa [#allocation4], 0
    %12 = vsyncpa [#allocation7], 0
    %13 = vsyncpa [#allocation5], 0
    // Predicated region
    $region2: #{tpu_custom_call.1} parent=1 // pred_check
      _
    $region3: #{tpu_custom_call.1} parent=1 // pred_check_branch
      %15 = sbr.rel (0) target = $region5
    $region4: #{tpu_custom_call.1} parent=1 // pred_region
      %s17 = ssub.s32 896, 896
      %18 = vsyncadd [#allocation4], %s17
      %s20 = sshll.u32 [#allocation3], 4
      %s21 = int_to_ptr.vmem [resolvable:$true] %s20
      %23 = dma.hbm_to_vmem [thread:$0]  %s0, 896, %s21, [#allocation4]
    $region5: #{tpu_custom_call.1} parent=1 // pred_fallthru
      _
    // Predicated region
    $region6: #{tpu_custom_call.1} parent=1 // pred_check
      _
    $region7: #{tpu_custom_call.1} parent=1 // pred_check_branch
      %25 = sbr.rel (0) target = $region9
    $region8: #{tpu_custom_call.1} parent=1 // pred_region
      %s27 = ssub.s32 25088, 25088
      %28 = vsyncadd [#allocation7], %s27
      %s29 = sshll.u32 [#allocation6], 4
      %s30 = int_to_ptr.vmem [resolvable:$true] %s29
      %35 = dma.hbm_to_vmem [thread:$0]  %s1, 25088, %s30, [#allocation7], 256, 256, 16
    $region9: #{tpu_custom_call.1} parent=1 // pred_fallthru
      _
    // Predicated region
    $region10: #{tpu_custom_call.1} parent=1 // pred_check
      _
    $region11: #{tpu_custom_call.1} parent=1 // pred_check_branch
      %37 = sbr.rel (0) target = $region13
    $region12: #{tpu_custom_call.1} parent=1 // pred_region
      _
    $region13: #{tpu_custom_call.1} parent=1 // pred_fallthru
      _
    // Predicated region
    $region14: #{tpu_custom_call.1} parent=1 // pred_check
      _
    $region15: #{tpu_custom_call.1} parent=1 // pred_check_branch
      %39 = sbr.rel (0) target = $region17
    $region16: #{tpu_custom_call.1} parent=1 // pred_region
      _
    $region17: #{tpu_custom_call.1} parent=1 // pred_fallthru
      _
    // Predicated region
    $region18: #{tpu_custom_call.1} parent=1 // pred_check
      _
    $region19: #{tpu_custom_call.1} parent=1 // pred_check_branch
      %41 = sbr.rel (0) target = $region21
    $region20: #{tpu_custom_call.1} parent=1 // pred_region
      _
    $region21: #{tpu_custom_call.1} parent=1 // pred_fallthru
      _
    // Predicated region
    $region22: #{tpu_custom_call.1} parent=1 // pred_check
      _
    $region23: #{tpu_custom_call.1} parent=1 // pred_check_branch
      %43 = sbr.rel (0) target = $region25
    $region24: #{tpu_custom_call.1} parent=1 // pred_region
      %44 = dma.done [#allocation4], 896
    $region25: #{tpu_custom_call.1} parent=1 // pred_fallthru
      _
    // Predicated region
    $region26: #{tpu_custom_call.1} parent=1 // pred_check
      _
    $region27: #{tpu_custom_call.1} parent=1 // pred_check_branch
      %46 = sbr.rel (0) target = $region29
    $region28: #{tpu_custom_call.1} parent=1 // pred_region
      %47 = dma.done [#allocation7], 25088
    $region29: #{tpu_custom_call.1} parent=1 // pred_fallthru
      _
    %v48 = vld [vmem:[#allocation3] sm:$0xff]
    %v49 = vld [vmem:[#allocation3 + $0x8] sm:$0xff]
    %v50 = vld [vmem:[#allocation3 + $0x10] sm:$0xff]
    %v51 = vld [vmem:[#allocation3 + $0x18] sm:$0xff]
    %v52 = vld [vmem:[#allocation3 + $0x20] sm:$0xff]
    %v53 = vld [vmem:[#allocation3 + $0x28] sm:$0xff]
    %v54 = vld [vmem:[#allocation3 + $0x30] sm:$0xff]
    %v55 = vld [vmem:[#allocation6] sm:$0xff]
    %v56 = vld [vmem:[#allocation6 + $0x8] sm:$0xff]
    %v57 = vld [vmem:[#allocation6 + $0x10] sm:$0xff]
    %v58 = vld [vmem:[#allocation6 + $0x18] sm:$0xff]
    %v59 = vld [vmem:[#allocation6 + $0x20] sm:$0xff]
    %v60 = vld [vmem:[#allocation6 + $0x28] sm:$0xff]
    %v61 = vld [vmem:[#allocation6 + $0x30] sm:$0xff]
    %v62 = vld [vmem:[#allocation6 + $0x38] sm:$0xff]
    %v63 = vld [vmem:[#allocation6 + $0x40] sm:$0xff]
    %v64 = vld [vmem:[#allocation6 + $0x48] sm:$0xff]
    %v65 = vld [vmem:[#allocation6 + $0x50] sm:$0xff]
    %v66 = vld [vmem:[#allocation6 + $0x58] sm:$0xff]
    %v67 = vld [vmem:[#allocation6 + $0x60] sm:$0xff]
    %v68 = vld [vmem:[#allocation6 + $0x68] sm:$0xff]
    %v69 = vld [vmem:[#allocation6 + $0x70] sm:$0xff]
    %v70 = vld [vmem:[#allocation6 + $0x78] sm:$0xff]
    %v71 = vld [vmem:[#allocation6 + $0x80] sm:$0xff]
    %v72 = vld [vmem:[#allocation6 + $0x88] sm:$0xff]
    %v73 = vld [vmem:[#allocation6 + $0x90] sm:$0xff]
    %v74 = vld [vmem:[#allocation6 + $0x98] sm:$0xff]
    %v75 = vld [vmem:[#allocation6 + $0xa0] sm:$0xff]
    %v76 = vld [vmem:[#allocation6 + $0xa8] sm:$0xff]
    %v77 = vld [vmem:[#allocation6 + $0xb0] sm:$0xff]
    %v78 = vld [vmem:[#allocation6 + $0xb8] sm:$0xff]
    %v79 = vld [vmem:[#allocation6 + $0xc0] sm:$0xff]
    %v80 = vld [vmem:[#allocation6 + $0xc8] sm:$0xff]
    %v81 = vld [vmem:[#allocation6 + $0xd0] sm:$0xff]
    %v82 = vld [vmem:[#allocation6 + $0xd8] sm:$0xff]
    %v83 = vld [vmem:[#allocation6 + $0xe0] sm:$0xff]
    %v84 = vld [vmem:[#allocation6 + $0xe8] sm:$0xff]
    %v85 = vld [vmem:[#allocation6 + $0xf0] sm:$0xff]
    %v86 = vld [vmem:[#allocation6 + $0xf8] sm:$0xff]
    %v87 = vld [vmem:[#allocation6 + $0x100] sm:$0xff]
    %v88 = vld [vmem:[#allocation6 + $0x108] sm:$0xff]
    %v89 = vld [vmem:[#allocation6 + $0x110] sm:$0xff]
    %v90 = vld [vmem:[#allocation6 + $0x118] sm:$0xff]
    %v91 = vld [vmem:[#allocation6 + $0x120] sm:$0xff]
    %v92 = vld [vmem:[#allocation6 + $0x128] sm:$0xff]
    %v93 = vld [vmem:[#allocation6 + $0x130] sm:$0xff]
    %v94 = vld [vmem:[#allocation6 + $0x138] sm:$0xff]
    %v95 = vld [vmem:[#allocation6 + $0x140] sm:$0xff]
    %v96 = vld [vmem:[#allocation6 + $0x148] sm:$0xff]
    %v97 = vld [vmem:[#allocation6 + $0x150] sm:$0xff]
    %v98 = vld [vmem:[#allocation6 + $0x158] sm:$0xff]
    %v99 = vld [vmem:[#allocation6 + $0x160] sm:$0xff]
    %v100 = vld [vmem:[#allocation6 + $0x168] sm:$0xff]
    %v101 = vld [vmem:[#allocation6 + $0x170] sm:$0xff]
    %v102 = vld [vmem:[#allocation6 + $0x178] sm:$0xff]
    %v103 = vld [vmem:[#allocation6 + $0x180] sm:$0xff]
    %v104 = vld [vmem:[#allocation6 + $0x188] sm:$0xff]
    %v105 = vld [vmem:[#allocation6 + $0x190] sm:$0xff]
    %v106 = vld [vmem:[#allocation6 + $0x198] sm:$0xff]
    %v107 = vld [vmem:[#allocation6 + $0x1a0] sm:$0xff]
    %v108 = vld [vmem:[#allocation6 + $0x1a8] sm:$0xff]
    %v109 = vld [vmem:[#allocation6 + $0x1b0] sm:$0xff]
    %v110 = vld [vmem:[#allocation6 + $0x1b8] sm:$0xff]
    %v111 = vld [vmem:[#allocation6 + $0x1c0] sm:$0xff]
    %v112 = vld [vmem:[#allocation6 + $0x1c8] sm:$0xff]
    %v113 = vld [vmem:[#allocation6 + $0x1d0] sm:$0xff]
    %v114 = vld [vmem:[#allocation6 + $0x1d8] sm:$0xff]
    %v115 = vld [vmem:[#allocation6 + $0x1e0] sm:$0xff]
    %v116 = vld [vmem:[#allocation6 + $0x1e8] sm:$0xff]
    %v117 = vld [vmem:[#allocation6 + $0x1f0] sm:$0xff]
    %v118 = vld [vmem:[#allocation6 + $0x1f8] sm:$0xff]
    %v119 = vld [vmem:[#allocation6 + $0x200] sm:$0xff]
    %v120 = vld [vmem:[#allocation6 + $0x208] sm:$0xff]
    %v121 = vld [vmem:[#allocation6 + $0x210] sm:$0xff]
    %v122 = vld [vmem:[#allocation6 + $0x218] sm:$0xff]
    %v123 = vld [vmem:[#allocation6 + $0x220] sm:$0xff]
    %v124 = vld [vmem:[#allocation6 + $0x228] sm:$0xff]
    %v125 = vld [vmem:[#allocation6 + $0x230] sm:$0xff]
    %v126 = vld [vmem:[#allocation6 + $0x238] sm:$0xff]
    %v127 = vld [vmem:[#allocation6 + $0x240] sm:$0xff]
    %v128 = vld [vmem:[#allocation6 + $0x248] sm:$0xff]
    %v129 = vld [vmem:[#allocation6 + $0x250] sm:$0xff]
    %v130 = vld [vmem:[#allocation6 + $0x258] sm:$0xff]
    %v131 = vld [vmem:[#allocation6 + $0x260] sm:$0xff]
    %v132 = vld [vmem:[#allocation6 + $0x268] sm:$0xff]
    %v133 = vld [vmem:[#allocation6 + $0x270] sm:$0xff]
    %v134 = vld [vmem:[#allocation6 + $0x278] sm:$0xff]
    %v135 = vld [vmem:[#allocation6 + $0x280] sm:$0xff]
    %v136 = vld [vmem:[#allocation6 + $0x288] sm:$0xff]
    %v137 = vld [vmem:[#allocation6 + $0x290] sm:$0xff]
    %v138 = vld [vmem:[#allocation6 + $0x298] sm:$0xff]
    %v139 = vld [vmem:[#allocation6 + $0x2a0] sm:$0xff]
    %v140 = vld [vmem:[#allocation6 + $0x2a8] sm:$0xff]
    %v141 = vld [vmem:[#allocation6 + $0x2b0] sm:$0xff]
    %v142 = vld [vmem:[#allocation6 + $0x2b8] sm:$0xff]
    %v143 = vld [vmem:[#allocation6 + $0x2c0] sm:$0xff]
    %v144 = vld [vmem:[#allocation6 + $0x2c8] sm:$0xff]
    %v145 = vld [vmem:[#allocation6 + $0x2d0] sm:$0xff]
    %v146 = vld [vmem:[#allocation6 + $0x2d8] sm:$0xff]
    %v147 = vld [vmem:[#allocation6 + $0x2e0] sm:$0xff]
    %v148 = vld [vmem:[#allocation6 + $0x2e8] sm:$0xff]
    %v149 = vld [vmem:[#allocation6 + $0x2f0] sm:$0xff]
    %v150 = vld [vmem:[#allocation6 + $0x2f8] sm:$0xff]
    %v151 = vld [vmem:[#allocation6 + $0x300] sm:$0xff]
    %v152 = vld [vmem:[#allocation6 + $0x308] sm:$0xff]
    %v153 = vld [vmem:[#allocation6 + $0x310] sm:$0xff]
    %v154 = vld [vmem:[#allocation6 + $0x318] sm:$0xff]
    %v155 = vld [vmem:[#allocation6 + $0x320] sm:$0xff]
    %v156 = vld [vmem:[#allocation6 + $0x328] sm:$0xff]
    %v157 = vld [vmem:[#allocation6 + $0x330] sm:$0xff]
    %v158 = vld [vmem:[#allocation6 + $0x338] sm:$0xff]
    %v159 = vld [vmem:[#allocation6 + $0x340] sm:$0xff]
    %v160 = vld [vmem:[#allocation6 + $0x348] sm:$0xff]
    %v161 = vld [vmem:[#allocation6 + $0x350] sm:$0xff]
    %v162 = vld [vmem:[#allocation6 + $0x358] sm:$0xff]
    %v163 = vld [vmem:[#allocation6 + $0x360] sm:$0xff]
    %v164 = vld [vmem:[#allocation6 + $0x368] sm:$0xff]
    %v165 = vld [vmem:[#allocation6 + $0x370] sm:$0xff]
    %v166 = vld [vmem:[#allocation6 + $0x378] sm:$0xff]
    %v167 = vld [vmem:[#allocation6 + $0x380] sm:$0xff]
    %v168 = vld [vmem:[#allocation6 + $0x388] sm:$0xff]
    %v169 = vld [vmem:[#allocation6 + $0x390] sm:$0xff]
    %v170 = vld [vmem:[#allocation6 + $0x398] sm:$0xff]
    %v171 = vld [vmem:[#allocation6 + $0x3a0] sm:$0xff]
    %v172 = vld [vmem:[#allocation6 + $0x3a8] sm:$0xff]
    %v173 = vld [vmem:[#allocation6 + $0x3b0] sm:$0xff]
    %v174 = vld [vmem:[#allocation6 + $0x3b8] sm:$0xff]
    %v175 = vld [vmem:[#allocation6 + $0x3c0] sm:$0xff]
    %v176 = vld [vmem:[#allocation6 + $0x3c8] sm:$0xff]
    %v177 = vld [vmem:[#allocation6 + $0x3d0] sm:$0xff]
    %v178 = vld [vmem:[#allocation6 + $0x3d8] sm:$0xff]
    %v179 = vld [vmem:[#allocation6 + $0x3e0] sm:$0xff]
    %v180 = vld [vmem:[#allocation6 + $0x3e8] sm:$0xff]
    %v181 = vld [vmem:[#allocation6 + $0x3f0] sm:$0xff]
    %v182 = vld [vmem:[#allocation6 + $0x3f8] sm:$0xff]
    %v183 = vld [vmem:[#allocation6 + $0x400] sm:$0xff]
    %v184 = vld [vmem:[#allocation6 + $0x408] sm:$0xff]
    %v185 = vld [vmem:[#allocation6 + $0x410] sm:$0xff]
    %v186 = vld [vmem:[#allocation6 + $0x418] sm:$0xff]
    %v187 = vld [vmem:[#allocation6 + $0x420] sm:$0xff]
    %v188 = vld [vmem:[#allocation6 + $0x428] sm:$0xff]
    %v189 = vld [vmem:[#allocation6 + $0x430] sm:$0xff]
    %v190 = vld [vmem:[#allocation6 + $0x438] sm:$0xff]
    %v191 = vld [vmem:[#allocation6 + $0x440] sm:$0xff]
    %v192 = vld [vmem:[#allocation6 + $0x448] sm:$0xff]
    %v193 = vld [vmem:[#allocation6 + $0x450] sm:$0xff]
    %v194 = vld [vmem:[#allocation6 + $0x458] sm:$0xff]
    %v195 = vld [vmem:[#allocation6 + $0x460] sm:$0xff]
    %v196 = vld [vmem:[#allocation6 + $0x468] sm:$0xff]
    %v197 = vld [vmem:[#allocation6 + $0x470] sm:$0xff]
    %v198 = vld [vmem:[#allocation6 + $0x478] sm:$0xff]
    %v199 = vld [vmem:[#allocation6 + $0x480] sm:$0xff]
    %v200 = vld [vmem:[#allocation6 + $0x488] sm:$0xff]
    %v201 = vld [vmem:[#allocation6 + $0x490] sm:$0xff]
    %v202 = vld [vmem:[#allocation6 + $0x498] sm:$0xff]
    %v203 = vld [vmem:[#allocation6 + $0x4a0] sm:$0xff]
    %v204 = vld [vmem:[#allocation6 + $0x4a8] sm:$0xff]
    %v205 = vld [vmem:[#allocation6 + $0x4b0] sm:$0xff]
    %v206 = vld [vmem:[#allocation6 + $0x4b8] sm:$0xff]
    %v207 = vld [vmem:[#allocation6 + $0x4c0] sm:$0xff]
    %v208 = vld [vmem:[#allocation6 + $0x4c8] sm:$0xff]
    %v209 = vld [vmem:[#allocation6 + $0x4d0] sm:$0xff]
    %v210 = vld [vmem:[#allocation6 + $0x4d8] sm:$0xff]
    %v211 = vld [vmem:[#allocation6 + $0x4e0] sm:$0xff]
    %v212 = vld [vmem:[#allocation6 + $0x4e8] sm:$0xff]
    %v213 = vld [vmem:[#allocation6 + $0x4f0] sm:$0xff]
    %v214 = vld [vmem:[#allocation6 + $0x4f8] sm:$0xff]
    %v215 = vld [vmem:[#allocation6 + $0x500] sm:$0xff]
    %v216 = vld [vmem:[#allocation6 + $0x508] sm:$0xff]
    %v217 = vld [vmem:[#allocation6 + $0x510] sm:$0xff]
    %v218 = vld [vmem:[#allocation6 + $0x518] sm:$0xff]
    %v219 = vld [vmem:[#allocation6 + $0x520] sm:$0xff]
    %v220 = vld [vmem:[#allocation6 + $0x528] sm:$0xff]
    %v221 = vld [vmem:[#allocation6 + $0x530] sm:$0xff]
    %v222 = vld [vmem:[#allocation6 + $0x538] sm:$0xff]
    %v223 = vld [vmem:[#allocation6 + $0x540] sm:$0xff]
    %v224 = vld [vmem:[#allocation6 + $0x548] sm:$0xff]
    %v225 = vld [vmem:[#allocation6 + $0x550] sm:$0xff]
    %v226 = vld [vmem:[#allocation6 + $0x558] sm:$0xff]
    %v227 = vld [vmem:[#allocation6 + $0x560] sm:$0xff]
    %v228 = vld [vmem:[#allocation6 + $0x568] sm:$0xff]
    %v229 = vld [vmem:[#allocation6 + $0x570] sm:$0xff]
    %v230 = vld [vmem:[#allocation6 + $0x578] sm:$0xff]
    %v231 = vld [vmem:[#allocation6 + $0x580] sm:$0xff]
    %v232 = vld [vmem:[#allocation6 + $0x588] sm:$0xff]
    %v233 = vld [vmem:[#allocation6 + $0x590] sm:$0xff]
    %v234 = vld [vmem:[#allocation6 + $0x598] sm:$0xff]
    %v235 = vld [vmem:[#allocation6 + $0x5a0] sm:$0xff]
    %v236 = vld [vmem:[#allocation6 + $0x5a8] sm:$0xff]
    %v237 = vld [vmem:[#allocation6 + $0x5b0] sm:$0xff]
    %v238 = vld [vmem:[#allocation6 + $0x5b8] sm:$0xff]
    %v239 = vld [vmem:[#allocation6 + $0x5c0] sm:$0xff]
    %v240 = vld [vmem:[#allocation6 + $0x5c8] sm:$0xff]
    %v241 = vld [vmem:[#allocation6 + $0x5d0] sm:$0xff]
    %v242 = vld [vmem:[#allocation6 + $0x5d8] sm:$0xff]
    %v243 = vld [vmem:[#allocation6 + $0x5e0] sm:$0xff]
    %v244 = vld [vmem:[#allocation6 + $0x5e8] sm:$0xff]
    %v245 = vld [vmem:[#allocation6 + $0x5f0] sm:$0xff]
    %v246 = vld [vmem:[#allocation6 + $0x5f8] sm:$0xff]
    %v247 = vld [vmem:[#allocation6 + $0x600] sm:$0xff]
    %v248 = vld [vmem:[#allocation6 + $0x608] sm:$0xff]
    %v249 = vld [vmem:[#allocation6 + $0x610] sm:$0xf]
    %v250 = vld [vmem:[#allocation6 + $0x618] sm:$0xf]
    %v251 = vld [vmem:[%s2] sm:$0x3]
    %v253 = vlaneseq
    %v254 = vshrl.u32 %v253, 7
    %v255 = vsub.s32 0, %v254
    %v256 = vrot.slane %v251, %v255
    %v257 = vlaneseq
    %v258 = vshrl.u32 %v257, 7
    %v259 = vsub.s32 1, %v258
    %v260 = vrot.slane %v251, %v259
    %vm263 = vcmask 97280
    %v265 = vsel %vm263, %v54, 0
    %vm267 = vcmask 1043456
    %v269 = vsel %vm267, %v249, 0
    %v272 = vsel %vm267, %v250, 0
    %274 = vmatprep.subr.mxu0 %v56
    %275 = vmatpush1.msra.mxu0 %v55
    %276 = vmatprep.subr.mxu0 %v58
    %277 = vmatpush1.msra.mxu0 %v57
    %278 = vmatprep.subr.mxu0 %v60
    %279 = vmatpush1.msra.mxu0 %v59
    %280 = vmatprep.subr.mxu0 %v62
    %281 = vmatpush1.msra.mxu0 %v61
    %282 = vmatprep.subr.mxu0 %v64
    %283 = vmatpush1.msra.mxu0 %v63
    %284 = vmatprep.subr.mxu0 %v66
    %285 = vmatpush1.msra.mxu0 %v65
    %286 = vmatprep.subr.mxu0 %v68
    %287 = vmatpush1.msra.mxu0 %v67
    %288 = vmatprep.subr.mxu0 %v70
    %289 = vmatpush1.msra.mxu0 %v69
    %290 = vmatprep.subr.mxu0 %v72
    %291 = vmatpush1.msra.mxu0 %v71
    %292 = vmatprep.subr.mxu0 %v74
    %293 = vmatpush1.msra.mxu0 %v73
    %294 = vmatprep.subr.mxu0 %v76
    %295 = vmatpush1.msra.mxu0 %v75
    %296 = vmatprep.subr.mxu0 %v78
    %297 = vmatpush1.msra.mxu0 %v77
    %298 = vmatprep.subr.mxu0 %v80
    %299 = vmatpush1.msra.mxu0 %v79
    %300 = vmatprep.subr.mxu0 %v82
    %301 = vmatpush1.msra.mxu0 %v81
    %302 = vmatprep.subr.mxu0 %v84
    %303 = vmatpush1.msra.mxu0 %v83
    %304 = vmatprep.subr.mxu0 %v86
    %305 = vmatpush1.msra.mxu0 %v85
    %306 = vmatprep.subr.mxu0 %v88
    %307 = vmatpush1.msra.mxu0 %v87
    %308 = vmatprep.subr.mxu0 %v90
    %309 = vmatpush1.msra.mxu0 %v89
    %310 = vmatprep.subr.mxu0 %v92
    %311 = vmatpush1.msra.mxu0 %v91
    %312 = vmatprep.subr.mxu0 %v94
    %313 = vmatpush1.msra.mxu0 %v93
    %314 = vmatprep.subr.mxu0 %v96
    %315 = vmatpush1.msra.mxu0 %v95
    %316 = vmatprep.subr.mxu0 %v98
    %317 = vmatpush1.msra.mxu0 %v97
    %318 = vmatprep.subr.mxu0 %v100
    %319 = vmatpush1.msra.mxu0 %v99
    %320 = vmatprep.subr.mxu0 %v102
    %321 = vmatpush1.msra.mxu0 %v101
    %322 = vmatprep.subr.mxu0 %v104
    %323 = vmatpush1.msra.mxu0 %v103
    %324 = vmatprep.subr.mxu0 %v106
    %325 = vmatpush1.msra.mxu0 %v105
    %326 = vmatprep.subr.mxu0 %v108
    %327 = vmatpush1.msra.mxu0 %v107
    %328 = vmatprep.subr.mxu0 %v110
    %329 = vmatpush1.msra.mxu0 %v109
    %330 = vmatprep.subr.mxu0 %v112
    %331 = vmatpush1.msra.mxu0 %v111
    %332 = vmatprep.subr.mxu0 %v114
    %333 = vmatpush1.msra.mxu0 %v113
    %334 = vmatprep.subr.mxu0 %v116
    %335 = vmatpush1.msra.mxu0 %v115
    %336 = vmatprep.subr.mxu0 %v118
    %337 = vmatpush1.msra.mxu0 %v117
    %338 = vmatprep.mubr.f32.mxu0 %v49
    %339 = vmatmul.mubr.f32.gmra.mrb[0].mxu0 %v48
    %v340 = vpop.f32.mrb[0].mxu0
    %v341 = vadd.f32 %v256, %v340
    %v342 = vpop.f32.mrb[0].mxu0
    %v343 = vadd.f32 %v260, %v342
    %344 = vdwg.mxu0
    %345 = vmatprep.subr.mxu0 %v120
    %346 = vmatpush1.msra.mxu0 %v119
    %347 = vmatprep.subr.mxu0 %v122
    %348 = vmatpush1.msra.mxu0 %v121
    %349 = vmatprep.subr.mxu0 %v124
    %350 = vmatpush1.msra.mxu0 %v123
    %351 = vmatprep.subr.mxu0 %v126
    %352 = vmatpush1.msra.mxu0 %v125
    %353 = vmatprep.subr.mxu0 %v128
    %354 = vmatpush1.msra.mxu0 %v127
    %355 = vmatprep.subr.mxu0 %v130
    %356 = vmatpush1.msra.mxu0 %v129
    %357 = vmatprep.subr.mxu0 %v132
    %358 = vmatpush1.msra.mxu0 %v131
    %359 = vmatprep.subr.mxu0 %v134
    %360 = vmatpush1.msra.mxu0 %v133
    %361 = vmatprep.subr.mxu0 %v136
    %362 = vmatpush1.msra.mxu0 %v135
    %363 = vmatprep.subr.mxu0 %v138
    %364 = vmatpush1.msra.mxu0 %v137
    %365 = vmatprep.subr.mxu0 %v140
    %366 = vmatpush1.msra.mxu0 %v139
    %367 = vmatprep.subr.mxu0 %v142
    %368 = vmatpush1.msra.mxu0 %v141
    %369 = vmatprep.subr.mxu0 %v144
    %370 = vmatpush1.msra.mxu0 %v143
    %371 = vmatprep.subr.mxu0 %v146
    %372 = vmatpush1.msra.mxu0 %v145
    %373 = vmatprep.subr.mxu0 %v148
    %374 = vmatpush1.msra.mxu0 %v147
    %375 = vmatprep.subr.mxu0 %v150
    %376 = vmatpush1.msra.mxu0 %v149
    %377 = vmatprep.subr.mxu0 %v152
    %378 = vmatpush1.msra.mxu0 %v151
    %379 = vmatprep.subr.mxu0 %v154
    %380 = vmatpush1.msra.mxu0 %v153
    %381 = vmatprep.subr.mxu0 %v156
    %382 = vmatpush1.msra.mxu0 %v155
    %383 = vmatprep.subr.mxu0 %v158
    %384 = vmatpush1.msra.mxu0 %v157
    %385 = vmatprep.subr.mxu0 %v160
    %386 = vmatpush1.msra.mxu0 %v159
    %387 = vmatprep.subr.mxu0 %v162
    %388 = vmatpush1.msra.mxu0 %v161
    %389 = vmatprep.subr.mxu0 %v164
    %390 = vmatpush1.msra.mxu0 %v163
    %391 = vmatprep.subr.mxu0 %v166
    %392 = vmatpush1.msra.mxu0 %v165
    %393 = vmatprep.subr.mxu0 %v168
    %394 = vmatpush1.msra.mxu0 %v167
    %395 = vmatprep.subr.mxu0 %v170
    %396 = vmatpush1.msra.mxu0 %v169
    %397 = vmatprep.subr.mxu0 %v172
    %398 = vmatpush1.msra.mxu0 %v171
    %399 = vmatprep.subr.mxu0 %v174
    %400 = vmatpush1.msra.mxu0 %v173
    %401 = vmatprep.subr.mxu0 %v176
    %402 = vmatpush1.msra.mxu0 %v175
    %403 = vmatprep.subr.mxu0 %v178
    %404 = vmatpush1.msra.mxu0 %v177
    %405 = vmatprep.subr.mxu0 %v180
    %406 = vmatpush1.msra.mxu0 %v179
    %407 = vmatprep.subr.mxu0 %v182
    %408 = vmatpush1.msra.mxu0 %v181
    %409 = vmatprep.mubr.f32.mxu0 %v51
    %410 = vmatmul.mubr.f32.gmra.mrb[0].mxu0 %v50
    %v411 = vpop.f32.mrb[0].mxu0
    %v412 = vadd.f32 %v341, %v411
    %v413 = vpop.f32.mrb[0].mxu0
    %v414 = vadd.f32 %v343, %v413
    %415 = vdwg.mxu0
    %416 = vmatprep.subr.mxu0 %v184
    %417 = vmatpush1.msra.mxu0 %v183
    %418 = vmatprep.subr.mxu0 %v186
    %419 = vmatpush1.msra.mxu0 %v185
    %420 = vmatprep.subr.mxu0 %v188
    %421 = vmatpush1.msra.mxu0 %v187
    %422 = vmatprep.subr.mxu0 %v190
    %423 = vmatpush1.msra.mxu0 %v189
    %424 = vmatprep.subr.mxu0 %v192
    %425 = vmatpush1.msra.mxu0 %v191
    %426 = vmatprep.subr.mxu0 %v194
    %427 = vmatpush1.msra.mxu0 %v193
    %428 = vmatprep.subr.mxu0 %v196
    %429 = vmatpush1.msra.mxu0 %v195
    %430 = vmatprep.subr.mxu0 %v198
    %431 = vmatpush1.msra.mxu0 %v197
    %432 = vmatprep.subr.mxu0 %v200
    %433 = vmatpush1.msra.mxu0 %v199
    %434 = vmatprep.subr.mxu0 %v202
    %435 = vmatpush1.msra.mxu0 %v201
    %436 = vmatprep.subr.mxu0 %v204
    %437 = vmatpush1.msra.mxu0 %v203
    %438 = vmatprep.subr.mxu0 %v206
    %439 = vmatpush1.msra.mxu0 %v205
    %440 = vmatprep.subr.mxu0 %v208
    %441 = vmatpush1.msra.mxu0 %v207
    %442 = vmatprep.subr.mxu0 %v210
    %443 = vmatpush1.msra.mxu0 %v209
    %444 = vmatprep.subr.mxu0 %v212
    %445 = vmatpush1.msra.mxu0 %v211
    %446 = vmatprep.subr.mxu0 %v214
    %447 = vmatpush1.msra.mxu0 %v213
    %448 = vmatprep.subr.mxu0 %v216
    %449 = vmatpush1.msra.mxu0 %v215
    %450 = vmatprep.subr.mxu0 %v218
    %451 = vmatpush1.msra.mxu0 %v217
    %452 = vmatprep.subr.mxu0 %v220
    %453 = vmatpush1.msra.mxu0 %v219
    %454 = vmatprep.subr.mxu0 %v222
    %455 = vmatpush1.msra.mxu0 %v221
    %456 = vmatprep.subr.mxu0 %v224
    %457 = vmatpush1.msra.mxu0 %v223
    %458 = vmatprep.subr.mxu0 %v226
    %459 = vmatpush1.msra.mxu0 %v225
    %460 = vmatprep.subr.mxu0 %v228
    %461 = vmatpush1.msra.mxu0 %v227
    %462 = vmatprep.subr.mxu0 %v230
    %463 = vmatpush1.msra.mxu0 %v229
    %464 = vmatprep.subr.mxu0 %v232
    %465 = vmatpush1.msra.mxu0 %v231
    %466 = vmatprep.subr.mxu0 %v234
    %467 = vmatpush1.msra.mxu0 %v233
    %468 = vmatprep.subr.mxu0 %v236
    %469 = vmatpush1.msra.mxu0 %v235
    %470 = vmatprep.subr.mxu0 %v238
    %471 = vmatpush1.msra.mxu0 %v237
    %472 = vmatprep.subr.mxu0 %v240
    %473 = vmatpush1.msra.mxu0 %v239
    %474 = vmatprep.subr.mxu0 %v242
    %475 = vmatpush1.msra.mxu0 %v241
    %476 = vmatprep.subr.mxu0 %v244
    %477 = vmatpush1.msra.mxu0 %v243
    %478 = vmatprep.subr.mxu0 %v246
    %479 = vmatpush1.msra.mxu0 %v245
    %480 = vmatprep.mubr.f32.mxu0 %v53
    %481 = vmatmul.mubr.f32.gmra.mrb[0].mxu0 %v52
    %v482 = vpop.f32.mrb[0].mxu0
    %v483 = vadd.f32 %v412, %v482
    %v484 = vpop.f32.mrb[0].mxu0
    %v485 = vadd.f32 %v414, %v484
    %486 = vdwg.mxu0
    %487 = vmatprep.subr.mxu0 %v248
    %488 = vmatpush1.msra.mxu0 %v247
    %489 = vmatprep.subr.mxu0 %v272
    %490 = vmatpush1.msra.mxu0 %v269
    %491 = vmatprep.subr.mxu0 0.0
    %492 = vmatpush1.msra.mxu0 0.0
    %493 = vmatprep.subr.mxu0 0.0
    %494 = vmatpush1.msra.mxu0 0.0
    %495 = vmatprep.subr.mxu0 0.0
    %496 = vmatpush1.msra.mxu0 0.0
    %497 = vmatprep.subr.mxu0 0.0
    %498 = vmatpush1.msra.mxu0 0.0
    %499 = vmatprep.subr.mxu0 0.0
    %500 = vmatpush1.msra.mxu0 0.0
    %501 = vmatprep.subr.mxu0 0.0
    %502 = vmatpush1.msra.mxu0 0.0
    %503 = vmatprep.subr.mxu0 0.0
    %504 = vmatpush1.msra.mxu0 0.0
    %505 = vmatprep.subr.mxu0 0.0
    %506 = vmatpush1.msra.mxu0 0.0
    %507 = vmatprep.subr.mxu0 0.0
    %508 = vmatpush1.msra.mxu0 0.0
    %509 = vmatprep.subr.mxu0 0.0
    %510 = vmatpush1.msra.mxu0 0.0
    %511 = vmatprep.subr.mxu0 0.0
    %512 = vmatpush1.msra.mxu0 0.0
    %513 = vmatprep.subr.mxu0 0.0
    %514 = vmatpush1.msra.mxu0 0.0
    %515 = vmatprep.subr.mxu0 0.0
    %516 = vmatpush1.msra.mxu0 0.0
    %517 = vmatprep.subr.mxu0 0.0
    %518 = vmatpush1.msra.mxu0 0.0
    %519 = vmatprep.subr.mxu0 0.0
    %520 = vmatpush1.msra.mxu0 0.0
    %521 = vmatprep.subr.mxu0 0.0
    %522 = vmatpush1.msra.mxu0 0.0
    %523 = vmatprep.subr.mxu0 0.0
    %524 = vmatpush1.msra.mxu0 0.0
    %525 = vmatprep.subr.mxu0 0.0
    %526 = vmatpush1.msra.mxu0 0.0
    %527 = vmatprep.subr.mxu0 0.0
    %528 = vmatpush1.msra.mxu0 0.0
    %529 = vmatprep.subr.mxu0 0.0
    %530 = vmatpush1.msra.mxu0 0.0
    %531 = vmatprep.subr.mxu0 0.0
    %532 = vmatpush1.msra.mxu0 0.0
    %533 = vmatprep.subr.mxu0 0.0
    %534 = vmatpush1.msra.mxu0 0.0
    %535 = vmatprep.subr.mxu0 0.0
    %536 = vmatpush1.msra.mxu0 0.0
    %537 = vmatprep.subr.mxu0 0.0
    %538 = vmatpush1.msra.mxu0 0.0
    %539 = vmatprep.subr.mxu0 0.0
    %540 = vmatpush1.msra.mxu0 0.0
    %541 = vmatprep.subr.mxu0 0.0
    %542 = vmatpush1.msra.mxu0 0.0
    %543 = vmatprep.subr.mxu0 0.0
    %544 = vmatpush1.msra.mxu0 0.0
    %545 = vmatprep.subr.mxu0 0.0
    %546 = vmatpush1.msra.mxu0 0.0
    %547 = vmatprep.subr.mxu0 0.0
    %548 = vmatpush1.msra.mxu0 0.0
    %549 = vmatprep.subr.mxu0 0.0
    %550 = vmatpush1.msra.mxu0 0.0
    %551 = vmatprep.mubr.f32.mxu0 0.0
    %552 = vmatmul.mubr.f32.gmra.mrb[0].mxu0 %v265
    %v553 = vpop.f32.mrb[0].mxu0
    %v554 = vadd.f32 %v483, %v553
    %v555 = vpop.f32.mrb[0].mxu0
    %v556 = vadd.f32 %v485, %v555
    %557 = vdwg.mxu0
    %v558 = vmax.f32 %v554, 0.0
    %v559 = vmax.f32 %v556, 0.0
    %v560 = vld [vmem:[%s3] sm:$0x3]
    %v562 = vlaneseq
    %v563 = vshrl.u32 %v562, 7
    %v564 = vsub.s32 0, %v563
    %v565 = vrot.slane %v560, %v564
    %v566 = vlaneseq
    %v567 = vshrl.u32 %v566, 7
    %v568 = vsub.s32 1, %v567
    %v569 = vrot.slane %v560, %v568
    %v572 = vmul.f32 %v558, %v565
    %v573 = vmul.f32 %v559, %v569
    %v574 = vadd.f32 %v572, %v573
    %575 = vadd.xlane.f32.xlu0 %v574
    %v576 = vpop.xlane.xlu0 %575
    %s577 = sld [smem:[#allocation2]]
    %v578 = vstv %s577
    %v579 = vadd.f32 %v576, %v578
    %v581 = vlaneseq
    %v582 = vand.u32 %v581, 127
    %v583 = vlaneseq
    %v584 = vshrl.u32 %v583, 7
    %v585 = vsub.s32 %v582, %v584
    %v586 = vrot.slane %v579, %v585
    %vm588 = vcmask 57344
    %589 = vst.msk [vmem:[#allocation8] sm:$0x1] %vm588, %v586
    // Predicated region
    $region30: #{tpu_custom_call.1} parent=1 // pred_check
      _
    $region31: #{tpu_custom_call.1} parent=1 // pred_check_branch
      %591 = sbr.rel (0) target = $region33
    $region32: #{tpu_custom_call.1} parent=1 // pred_region
      %s593 = ssub.s32 16, 16
      %594 = vsyncadd [#allocation5], %s593
      %s596 = sshll.u32 [#allocation8], 4
      %s597 = int_to_ptr.vmem [resolvable:$true] %s596
      %599 = dma.vmem_to_hbm [thread:$0]  %s597, 16, %s5, [#allocation5]
    $region33: #{tpu_custom_call.1} parent=1 // pred_fallthru
      _
    // Predicated region
    $region34: #{tpu_custom_call.1} parent=1 // pred_check
      _
    $region35: #{tpu_custom_call.1} parent=1 // pred_check_branch
      %601 = sbr.rel (0) target = $region37
    $region36: #{tpu_custom_call.1} parent=1 // pred_region
      %602 = dma.done [#allocation5], 16
    $region37: #{tpu_custom_call.1} parent=1 // pred_fallthru
      _
    %603 = vsyncpa [#allocation4], 1
    %604 = vsyncpa [#allocation7], 1
    %605 = vsyncpa [#allocation5], 1

</llo_original>
